<compile_context>
chip_gen: v5e
topology: v5e:2x2
jax: 0.10.0
libtpu: 0.0.40
codegen_flags: <defaults>
</compile_context>

<pallas_src>
import jax
import jax.numpy as jnp
from jax import lax
from jax.experimental import pallas as pl
from jax.experimental.pallas import tpu as pltpu


def _round_up(x, m):
    return ((x + m - 1) // m) * m


def _fe_kernel(xg_ref, mask_ref, w1_ref, b1_ref, w2_ref, b2_ref, o_ref):
    # xg_ref : (Cin_p, NBLK)  lane-folded raw input (compute dtype); per-batch
    #          segment of stride P, data at in-segment columns [pad1+1, pad1+1+L),
    #          zeros elsewhere (those zeros realize the conv1 padding).
    # mask_ref: (1, NBLK) f32  1.0 on valid conv1-output columns, 0.0 on gaps.
    # w1_ref : (K*H, Cin_p)    conv1 weight with BN1 folded; tap k at rows [k*H,(k+1)*H).
    # b1_ref : (H, 1) f32      folded BN1 bias.
    # w2_ref : (K*O, H)        conv2 weight with BN2 folded; tap k at rows [k*O,(k+1)*O).
    # b2_ref : (O, 1) f32      folded BN2 bias.
    # o_ref  : (O, NBLK) f32   lane-dense output slab; batch b / time t at column b*P+t.
    NBLK = xg_ref.shape[1]
    H = b1_ref.shape[0]
    O = b2_ref.shape[0]
    K = w1_ref.shape[0] // H

    xg = xg_ref[...]
    w1 = w1_ref[...]
    w2 = w2_ref[...]

    # conv1 (+ folded BN1): K accumulate-dots over lane-rolled input.  Rolls use
    # the XLU (separate issue slot); the MXU has huge slack at these sizes, so
    # trading contraction depth for an 8x smaller input DMA is a clear win.
    acc1 = jnp.dot(w1[0:H, :], xg, preferred_element_type=jnp.float32)
    for k in range(1, K):
        xk = pltpu.roll(xg, shift=NBLK - k, axis=1)          # col j -> xg[:, j+k]
        acc1 = acc1 + jnp.dot(w1[k * H:(k + 1) * H, :], xk,
                              preferred_element_type=jnp.float32)

    # Bias + ReLU (Dropout(p=0) is identity in eval mode).  The mask zeroes the
    # inter-batch gap columns so they act as conv2's zero padding and kill any
    # relu(bias) / roll-wrap garbage outside the valid columns.
    h1 = jnp.maximum(acc1 + b1_ref[...], 0.0) * mask_ref[...]     # (H, NBLK) f32
    h1c = h1.astype(w2.dtype)

    # conv2 (+ folded BN2): same rolled accumulate-dot structure, contraction H.
    acc2 = jnp.dot(w2[0:O, :], h1c, preferred_element_type=jnp.float32)
    for k in range(1, K):
        hk = pltpu.roll(h1c, shift=NBLK - k, axis=1)
        acc2 = acc2 + jnp.dot(w2[k * O:(k + 1) * O, :], hk,
                              preferred_element_type=jnp.float32)

    o_ref[...] = jnp.maximum(acc2 + b2_ref[...], 0.0)


def feature_extractor_1dcnn_rul(x_in, params, *, kernel_size=8, eps=1e-5,
                                compute_dtype=jnp.bfloat16,
                                batch_tile=None, target_lanes=1024):
    """x_in: (B, L, C_in) float32.  Returns (B, out_dim, L_out) like PyTorch.

    compute_dtype=jnp.bfloat16 (default) feeds bf16 operands to the MXU while all
    accumulation and the bias/ReLU epilogue stay in float32.
    """
    w1 = params["w1"]        # (H, C_in, K)  PyTorch Conv1d weight layout
    w2 = params["w2"]        # (O, H, K)
    B, L, Cin = x_in.shape
    H, _, K = w1.shape
    O = w2.shape[0]
    assert K == kernel_size

    pad1 = kernel_size // 2
    L1 = L + 2 * pad1 - K + 1            # = L + 1
    L2 = L1 + 2 * 1 - K + 1              # = L - 4
    assert L2 > 0, "sequence too short for this conv stack"

    # Per-batch lane stride.  P >= L + 2*pad1 + 2 guarantees (a) conv windows never
    # cross batch segments and (b) roll wrap-around can never reach an extracted
    # output column (the wrapped columns land in the masked/dead tail only).
    P = L + 2 * pad1 + 2

    # ---- fold eval-mode BatchNorm into the conv weights (exact) ----
    s1 = params["g1"] / jnp.sqrt(params["rv1"] + eps)                   # (H,)
    b1 = params["be1"] - params["rm1"] * s1
    s2 = params["g2"] / jnp.sqrt(params["rv2"] + eps)                   # (O,)
    b2 = params["be2"] - params["rm2"] * s2
    w1_eff = w1.astype(jnp.float32) * s1[:, None, None]                 # (H, Cin, K)
    w2_eff = w2.astype(jnp.float32) * s2[:, None, None]                 # (O, H, K)

    # Tap-major 2D weights:  W1[k*H + h, c] = w1_eff[h, c, k]; W2[k*O + o, h] = w2_eff[o, h, k]
    Cin_p = _round_up(Cin, 8)
    w1_2d = jnp.transpose(w1_eff, (2, 0, 1))                            # (K, H, Cin)
    w1_2d = jnp.pad(w1_2d, ((0, 0), (0, 0), (0, Cin_p - Cin)))
    w1_2d = w1_2d.reshape(K * H, Cin_p).astype(compute_dtype)
    w2_2d = jnp.transpose(w2_eff, (2, 0, 1)).reshape(K * O, H).astype(compute_dtype)
    b1_2 = b1.reshape(H, 1).astype(jnp.float32)
    b2_2 = b2.reshape(O, 1).astype(jnp.float32)

    # ---- batch tiling: fold several batch rows into the lane dim per grid step.
    # Target ~1024 lanes/step (amortizes ~0.35us/step overhead) while keeping at
    # least ~4 grid blocks when the batch allows (2+ steps per v7x TensorCore).
    if batch_tile is None:
        bt = max(1, min(B, target_lanes // P))
        min_blocks = min(B, 4)
        if pl.cdiv(B, bt) < min_blocks:
            bt = max(1, pl.cdiv(B, min_blocks))
        batch_tile = bt
    bt = batch_tile
    nb = pl.cdiv(B, bt)
    Bp = nb * bt
    NBLK = _round_up(bt * P, 128)        # lane-dense block width (multiple of 128)

    # ---- lane-folded input:  x[b, :, i] lives at column (b%bt)*P + pad1 + 1 + i of
    # block b//bt; all other columns are zero (conv1 padding comes for free). ----
    x_ncl = jnp.transpose(x_in, (0, 2, 1)).astype(compute_dtype)        # (B, Cin, L)
    x_ncl = jnp.pad(x_ncl, ((0, Bp - B), (0, Cin_p - Cin),
                            (pad1 + 1, P - L - pad1 - 1)))              # (Bp, Cin_p, P)
    xg = jnp.transpose(x_ncl, (1, 0, 2)).reshape(Cin_p, nb, bt * P)
    xg = jnp.pad(xg, ((0, 0), (0, 0), (0, NBLK - bt * P)))
    xg = xg.reshape(Cin_p, nb * NBLK)                                   # (Cin_p, nb*NBLK)

    # Valid conv1-output columns within a block: in-segment offsets [1, L1].
    col = jnp.arange(NBLK, dtype=jnp.int32)
    r = col % P
    mask = ((r >= 1) & (r <= L1) & (col < bt * P)).astype(jnp.float32).reshape(1, NBLK)

    out_full = pl.pallas_call(
        _fe_kernel,
        out_shape=jax.ShapeDtypeStruct((O, nb * NBLK), jnp.float32),
        grid_spec=pltpu.PrefetchScalarGridSpec(
            num_scalar_prefetch=0,
            grid=(nb,),
            in_specs=[
                pl.BlockSpec((Cin_p, NBLK), lambda i: (0, i)),
                pl.BlockSpec((1, NBLK), lambda i: (0, 0)),
                pl.BlockSpec((K * H, Cin_p), lambda i: (0, 0)),
                pl.BlockSpec((H, 1), lambda i: (0, 0)),
                pl.BlockSpec((K * O, H), lambda i: (0, 0)),
                pl.BlockSpec((O, 1), lambda i: (0, 0)),
            ],
            out_specs=pl.BlockSpec((O, NBLK), lambda i: (0, i)),
        ),
        compiler_params=pltpu.CompilerParams(
            dimension_semantics=("parallel",)),
    )(xg, mask, w1_2d, b1_2, w2_2d, b2_2)

    # ---- unfold lanes back to PyTorch (B, out_dim, L_out); pure layout plumbing.
    out = out_full.reshape(O, nb, NBLK)[:, :, :bt * P]
    out = out.reshape(O, nb, bt, P)[:, :, :, :L2]
    out = jnp.transpose(out, (1, 2, 0, 3)).reshape(Bp, O, L2)
    return out[:B]


def _reference(x_in, params, *, kernel_size=8, eps=1e-5):
    """Pure-JAX reference mirroring the PyTorch module (eval-mode BN)."""
    def bn(y, g, be, rm, rv):
        s = g / jnp.sqrt(rv + eps)
        return y * s[None, :, None] + (be - rm * s)[None, :, None]

    x = jnp.transpose(x_in, (0, 2, 1))  # (B, Cin, L)
    y = lax.conv_general_dilated(
        x, params["w1"], (1,), [(kernel_size // 2, kernel_size // 2)],
        dimension_numbers=("NCH", "OIH", "NCH"))
    y = jnp.maximum(bn(y, params["g1"], params["be1"], params["rm1"], params["rv1"]), 0.0)
    y = lax.conv_general_dilated(
        y, params["w2"], (1,), [(1, 1)],
        dimension_numbers=("NCH", "OIH", "NCH"))
    y = jnp.maximum(bn(y, params["g2"], params["be2"], params["rm2"], params["rv2"]), 0.0)
    return y


if __name__ == "__main__":
    # Small deterministic config.
    B, L = 2, 16
    input_channels, num_hidden, out_dim, K = 4, 32, 16, 8

    root = jax.random.PRNGKey(0)
    ks = jax.random.split(root, 11)
    params = {
        "w1": 0.1 * jax.random.normal(ks[0], (num_hidden, input_channels, K), jnp.float32),
        "g1": 1.0 + 0.1 * jax.random.normal(ks[1], (num_hidden,), jnp.float32),
        "be1": 0.05 * jax.random.normal(ks[2], (num_hidden,), jnp.float32),
        "rm1": 0.1 * jax.random.normal(ks[3], (num_hidden,), jnp.float32),
        "rv1": jax.random.uniform(ks[4], (num_hidden,), jnp.float32, 0.5, 1.5),
        "w2": 0.1 * jax.random.normal(ks[5], (out_dim, num_hidden, K), jnp.float32),
        "g2": 1.0 + 0.1 * jax.random.normal(ks[6], (out_dim,), jnp.float32),
        "be2": 0.05 * jax.random.normal(ks[7], (out_dim,), jnp.float32),
        "rm2": 0.1 * jax.random.normal(ks[8], (out_dim,), jnp.float32),
        "rv2": jax.random.uniform(ks[9], (out_dim,), jnp.float32, 0.5, 1.5),
    }
    x_in = jax.random.normal(ks[10], (B, L, input_channels), jnp.float32)

    ref = _reference(x_in, params, kernel_size=K)

    # f32 compute path (tight tolerance vs. reference).
    out = feature_extractor_1dcnn_rul(x_in, params, kernel_size=K,
                                      compute_dtype=jnp.float32)
    out = jax.block_until_ready(out)
    assert out.shape == (B, out_dim, L - 4), out.shape
    assert jnp.allclose(out, ref, atol=1e-4, rtol=1e-4), float(jnp.max(jnp.abs(out - ref)))

    # Default bf16 MXU-operand path (recommended on v5e/v6e/v7x), f32 accumulation.
    out_bf16 = feature_extractor_1dcnn_rul(x_in, params, kernel_size=K)
    out_bf16 = jax.block_until_ready(out_bf16)
    assert out_bf16.shape == (B, out_dim, L - 4), out_bf16.shape
    assert jnp.allclose(out_bf16, ref, atol=5e-2, rtol=5e-2), \
        float(jnp.max(jnp.abs(out_bf16 - ref)))

    print("KERNEL_OK")
</pallas_src>

<mosaic_0001>
module attributes {stable_mosaic.version = 11 : i64} {
  func.func @_fe_kernel(%arg0: i32, %arg1: memref<8x128xf32, #tpu.memory_space<vmem>>, %arg2: memref<1x128xf32, #tpu.memory_space<vmem>>, %arg3: memref<256x8xf32, #tpu.memory_space<vmem>>, %arg4: memref<32x1xf32, #tpu.memory_space<vmem>>, %arg5: memref<128x32xf32, #tpu.memory_space<vmem>>, %arg6: memref<16x1xf32, #tpu.memory_space<vmem>>, %arg7: memref<16x128xf32, #tpu.memory_space<vmem>>) attributes {dimension_semantics = [#tpu.dimension_semantics<parallel>], iteration_bounds = array<i64: 2>, scalar_prefetch = 0 : i64, scratch_operands = 0 : i64, tpu.core_type = #tpu.core_type<tc>, window_params = [{transform_indices = @transform_0, window_bounds = array<i64: 8, 128>}, {pipeline_mode = #tpu.pipeline_mode<synchronous>, transform_indices = @transform_1, window_bounds = array<i64: 1, 128>}, {pipeline_mode = #tpu.pipeline_mode<synchronous>, transform_indices = @transform_2, window_bounds = array<i64: 256, 8>}, {pipeline_mode = #tpu.pipeline_mode<synchronous>, transform_indices = @transform_3, window_bounds = array<i64: 32, 1>}, {pipeline_mode = #tpu.pipeline_mode<synchronous>, transform_indices = @transform_4, window_bounds = array<i64: 128, 32>}, {pipeline_mode = #tpu.pipeline_mode<synchronous>, transform_indices = @transform_5, window_bounds = array<i64: 16, 1>}, {transform_indices = @transform_6, window_bounds = array<i64: 16, 128>}]} {
    %c0 = arith.constant 0 : index
    %c0_0 = arith.constant 0 : index
    %0 = vector.load %arg1[%c0, %c0_0] : memref<8x128xf32, #tpu.memory_space<vmem>>, vector<8x128xf32>
    %c0_1 = arith.constant 0 : index
    %c0_2 = arith.constant 0 : index
    %1 = vector.load %arg3[%c0_1, %c0_2] : memref<256x8xf32, #tpu.memory_space<vmem>>, vector<256x8xf32>
    %c0_3 = arith.constant 0 : index
    %c0_4 = arith.constant 0 : index
    %2 = vector.load %arg5[%c0_3, %c0_4] : memref<128x32xf32, #tpu.memory_space<vmem>>, vector<128x32xf32>
    %3 = vector.extract_strided_slice %1 {offsets = [0, 0], sizes = [32, 8], strides = [1, 1]} : vector<256x8xf32> to vector<32x8xf32>
    %cst = arith.constant dense<0.000000e+00> : vector<32x128xf32>
    %4 = tpu.matmul %3, %0, %cst {dimension_numbers = #tpu.dot_dimension_numbers<[1], [0], [0], [1], [0, 0, 1, 1], [], []>} : vector<32x8xf32>, vector<8x128xf32>, vector<32x128xf32> -> vector<32x128xf32>
    %c127_i32 = arith.constant 127 : i32
    %5 = tpu.dynamic_rotate %0 by %c127_i32 dim 1 : vector<8x128xf32>, i32 -> vector<8x128xf32>
    %6 = vector.extract_strided_slice %1 {offsets = [32, 0], sizes = [32, 8], strides = [1, 1]} : vector<256x8xf32> to vector<32x8xf32>
    %cst_5 = arith.constant dense<0.000000e+00> : vector<32x128xf32>
    %7 = tpu.matmul %6, %5, %cst_5 {dimension_numbers = #tpu.dot_dimension_numbers<[1], [0], [0], [1], [0, 0, 1, 1], [], []>} : vector<32x8xf32>, vector<8x128xf32>, vector<32x128xf32> -> vector<32x128xf32>
    %8 = arith.addf %4, %7 : vector<32x128xf32>
    %c126_i32 = arith.constant 126 : i32
    %9 = tpu.dynamic_rotate %0 by %c126_i32 dim 1 : vector<8x128xf32>, i32 -> vector<8x128xf32>
    %10 = vector.extract_strided_slice %1 {offsets = [64, 0], sizes = [32, 8], strides = [1, 1]} : vector<256x8xf32> to vector<32x8xf32>
    %cst_6 = arith.constant dense<0.000000e+00> : vector<32x128xf32>
    %11 = tpu.matmul %10, %9, %cst_6 {dimension_numbers = #tpu.dot_dimension_numbers<[1], [0], [0], [1], [0, 0, 1, 1], [], []>} : vector<32x8xf32>, vector<8x128xf32>, vector<32x128xf32> -> vector<32x128xf32>
    %12 = arith.addf %8, %11 : vector<32x128xf32>
    %c125_i32 = arith.constant 125 : i32
    %13 = tpu.dynamic_rotate %0 by %c125_i32 dim 1 : vector<8x128xf32>, i32 -> vector<8x128xf32>
    %14 = vector.extract_strided_slice %1 {offsets = [96, 0], sizes = [32, 8], strides = [1, 1]} : vector<256x8xf32> to vector<32x8xf32>
    %cst_7 = arith.constant dense<0.000000e+00> : vector<32x128xf32>
    %15 = tpu.matmul %14, %13, %cst_7 {dimension_numbers = #tpu.dot_dimension_numbers<[1], [0], [0], [1], [0, 0, 1, 1], [], []>} : vector<32x8xf32>, vector<8x128xf32>, vector<32x128xf32> -> vector<32x128xf32>
    %16 = arith.addf %12, %15 : vector<32x128xf32>
    %c124_i32 = arith.constant 124 : i32
    %17 = tpu.dynamic_rotate %0 by %c124_i32 dim 1 : vector<8x128xf32>, i32 -> vector<8x128xf32>
    %18 = vector.extract_strided_slice %1 {offsets = [128, 0], sizes = [32, 8], strides = [1, 1]} : vector<256x8xf32> to vector<32x8xf32>
    %cst_8 = arith.constant dense<0.000000e+00> : vector<32x128xf32>
    %19 = tpu.matmul %18, %17, %cst_8 {dimension_numbers = #tpu.dot_dimension_numbers<[1], [0], [0], [1], [0, 0, 1, 1], [], []>} : vector<32x8xf32>, vector<8x128xf32>, vector<32x128xf32> -> vector<32x128xf32>
    %20 = arith.addf %16, %19 : vector<32x128xf32>
    %c123_i32 = arith.constant 123 : i32
    %21 = tpu.dynamic_rotate %0 by %c123_i32 dim 1 : vector<8x128xf32>, i32 -> vector<8x128xf32>
    %22 = vector.extract_strided_slice %1 {offsets = [160, 0], sizes = [32, 8], strides = [1, 1]} : vector<256x8xf32> to vector<32x8xf32>
    %cst_9 = arith.constant dense<0.000000e+00> : vector<32x128xf32>
    %23 = tpu.matmul %22, %21, %cst_9 {dimension_numbers = #tpu.dot_dimension_numbers<[1], [0], [0], [1], [0, 0, 1, 1], [], []>} : vector<32x8xf32>, vector<8x128xf32>, vector<32x128xf32> -> vector<32x128xf32>
    %24 = arith.addf %20, %23 : vector<32x128xf32>
    %c122_i32 = arith.constant 122 : i32
    %25 = tpu.dynamic_rotate %0 by %c122_i32 dim 1 : vector<8x128xf32>, i32 -> vector<8x128xf32>
    %26 = vector.extract_strided_slice %1 {offsets = [192, 0], sizes = [32, 8], strides = [1, 1]} : vector<256x8xf32> to vector<32x8xf32>
    %cst_10 = arith.constant dense<0.000000e+00> : vector<32x128xf32>
    %27 = tpu.matmul %26, %25, %cst_10 {dimension_numbers = #tpu.dot_dimension_numbers<[1], [0], [0], [1], [0, 0, 1, 1], [], []>} : vector<32x8xf32>, vector<8x128xf32>, vector<32x128xf32> -> vector<32x128xf32>
    %28 = arith.addf %24, %27 : vector<32x128xf32>
    %c121_i32 = arith.constant 121 : i32
    %29 = tpu.dynamic_rotate %0 by %c121_i32 dim 1 : vector<8x128xf32>, i32 -> vector<8x128xf32>
    %30 = vector.extract_strided_slice %1 {offsets = [224, 0], sizes = [32, 8], strides = [1, 1]} : vector<256x8xf32> to vector<32x8xf32>
    %cst_11 = arith.constant dense<0.000000e+00> : vector<32x128xf32>
    %31 = tpu.matmul %30, %29, %cst_11 {dimension_numbers = #tpu.dot_dimension_numbers<[1], [0], [0], [1], [0, 0, 1, 1], [], []>} : vector<32x8xf32>, vector<8x128xf32>, vector<32x128xf32> -> vector<32x128xf32>
    %32 = arith.addf %28, %31 : vector<32x128xf32>
    %c0_12 = arith.constant 0 : index
    %c0_13 = arith.constant 0 : index
    %33 = vector.load %arg4[%c0_12, %c0_13] : memref<32x1xf32, #tpu.memory_space<vmem>>, vector<32x1xf32>
    %34 = vector.broadcast %33 : vector<32x1xf32> to vector<32x128xf32>
    %35 = arith.addf %32, %34 : vector<32x128xf32>
    %cst_14 = arith.constant 0.000000e+00 : f32
    %36 = vector.broadcast %cst_14 : f32 to vector<32x128xf32>
    %37 = arith.maximumf %35, %36 : vector<32x128xf32>
    %c0_15 = arith.constant 0 : index
    %c0_16 = arith.constant 0 : index
    %38 = vector.load %arg2[%c0_15, %c0_16] : memref<1x128xf32, #tpu.memory_space<vmem>>, vector<1x128xf32>
    %39 = vector.broadcast %38 : vector<1x128xf32> to vector<32x128xf32>
    %40 = arith.mulf %37, %39 : vector<32x128xf32>
    %41 = vector.extract_strided_slice %2 {offsets = [0, 0], sizes = [16, 32], strides = [1, 1]} : vector<128x32xf32> to vector<16x32xf32>
    %cst_17 = arith.constant dense<0.000000e+00> : vector<16x128xf32>
    %42 = tpu.matmul %41, %40, %cst_17 {dimension_numbers = #tpu.dot_dimension_numbers<[1], [0], [0], [1], [0, 0, 1, 1], [], []>} : vector<16x32xf32>, vector<32x128xf32>, vector<16x128xf32> -> vector<16x128xf32>
    %c127_i32_18 = arith.constant 127 : i32
    %43 = tpu.dynamic_rotate %40 by %c127_i32_18 dim 1 : vector<32x128xf32>, i32 -> vector<32x128xf32>
    %44 = vector.extract_strided_slice %2 {offsets = [16, 0], sizes = [16, 32], strides = [1, 1]} : vector<128x32xf32> to vector<16x32xf32>
    %cst_19 = arith.constant dense<0.000000e+00> : vector<16x128xf32>
    %45 = tpu.matmul %44, %43, %cst_19 {dimension_numbers = #tpu.dot_dimension_numbers<[1], [0], [0], [1], [0, 0, 1, 1], [], []>} : vector<16x32xf32>, vector<32x128xf32>, vector<16x128xf32> -> vector<16x128xf32>
    %46 = arith.addf %42, %45 : vector<16x128xf32>
    %c126_i32_20 = arith.constant 126 : i32
    %47 = tpu.dynamic_rotate %40 by %c126_i32_20 dim 1 : vector<32x128xf32>, i32 -> vector<32x128xf32>
    %48 = vector.extract_strided_slice %2 {offsets = [32, 0], sizes = [16, 32], strides = [1, 1]} : vector<128x32xf32> to vector<16x32xf32>
    %cst_21 = arith.constant dense<0.000000e+00> : vector<16x128xf32>
    %49 = tpu.matmul %48, %47, %cst_21 {dimension_numbers = #tpu.dot_dimension_numbers<[1], [0], [0], [1], [0, 0, 1, 1], [], []>} : vector<16x32xf32>, vector<32x128xf32>, vector<16x128xf32> -> vector<16x128xf32>
    %50 = arith.addf %46, %49 : vector<16x128xf32>
    %c125_i32_22 = arith.constant 125 : i32
    %51 = tpu.dynamic_rotate %40 by %c125_i32_22 dim 1 : vector<32x128xf32>, i32 -> vector<32x128xf32>
    %52 = vector.extract_strided_slice %2 {offsets = [48, 0], sizes = [16, 32], strides = [1, 1]} : vector<128x32xf32> to vector<16x32xf32>
    %cst_23 = arith.constant dense<0.000000e+00> : vector<16x128xf32>
    %53 = tpu.matmul %52, %51, %cst_23 {dimension_numbers = #tpu.dot_dimension_numbers<[1], [0], [0], [1], [0, 0, 1, 1], [], []>} : vector<16x32xf32>, vector<32x128xf32>, vector<16x128xf32> -> vector<16x128xf32>
    %54 = arith.addf %50, %53 : vector<16x128xf32>
    %c124_i32_24 = arith.constant 124 : i32
    %55 = tpu.dynamic_rotate %40 by %c124_i32_24 dim 1 : vector<32x128xf32>, i32 -> vector<32x128xf32>
    %56 = vector.extract_strided_slice %2 {offsets = [64, 0], sizes = [16, 32], strides = [1, 1]} : vector<128x32xf32> to vector<16x32xf32>
    %cst_25 = arith.constant dense<0.000000e+00> : vector<16x128xf32>
    %57 = tpu.matmul %56, %55, %cst_25 {dimension_numbers = #tpu.dot_dimension_numbers<[1], [0], [0], [1], [0, 0, 1, 1], [], []>} : vector<16x32xf32>, vector<32x128xf32>, vector<16x128xf32> -> vector<16x128xf32>
    %58 = arith.addf %54, %57 : vector<16x128xf32>
    %c123_i32_26 = arith.constant 123 : i32
    %59 = tpu.dynamic_rotate %40 by %c123_i32_26 dim 1 : vector<32x128xf32>, i32 -> vector<32x128xf32>
    %60 = vector.extract_strided_slice %2 {offsets = [80, 0], sizes = [16, 32], strides = [1, 1]} : vector<128x32xf32> to vector<16x32xf32>
    %cst_27 = arith.constant dense<0.000000e+00> : vector<16x128xf32>
    %61 = tpu.matmul %60, %59, %cst_27 {dimension_numbers = #tpu.dot_dimension_numbers<[1], [0], [0], [1], [0, 0, 1, 1], [], []>} : vector<16x32xf32>, vector<32x128xf32>, vector<16x128xf32> -> vector<16x128xf32>
    %62 = arith.addf %58, %61 : vector<16x128xf32>
    %c122_i32_28 = arith.constant 122 : i32
    %63 = tpu.dynamic_rotate %40 by %c122_i32_28 dim 1 : vector<32x128xf32>, i32 -> vector<32x128xf32>
    %64 = vector.extract_strided_slice %2 {offsets = [96, 0], sizes = [16, 32], strides = [1, 1]} : vector<128x32xf32> to vector<16x32xf32>
    %cst_29 = arith.constant dense<0.000000e+00> : vector<16x128xf32>
    %65 = tpu.matmul %64, %63, %cst_29 {dimension_numbers = #tpu.dot_dimension_numbers<[1], [0], [0], [1], [0, 0, 1, 1], [], []>} : vector<16x32xf32>, vector<32x128xf32>, vector<16x128xf32> -> vector<16x128xf32>
    %66 = arith.addf %62, %65 : vector<16x128xf32>
    %c121_i32_30 = arith.constant 121 : i32
    %67 = tpu.dynamic_rotate %40 by %c121_i32_30 dim 1 : vector<32x128xf32>, i32 -> vector<32x128xf32>
    %68 = vector.extract_strided_slice %2 {offsets = [112, 0], sizes = [16, 32], strides = [1, 1]} : vector<128x32xf32> to vector<16x32xf32>
    %cst_31 = arith.constant dense<0.000000e+00> : vector<16x128xf32>
    %69 = tpu.matmul %68, %67, %cst_31 {dimension_numbers = #tpu.dot_dimension_numbers<[1], [0], [0], [1], [0, 0, 1, 1], [], []>} : vector<16x32xf32>, vector<32x128xf32>, vector<16x128xf32> -> vector<16x128xf32>
    %70 = arith.addf %66, %69 : vector<16x128xf32>
    %c0_32 = arith.constant 0 : index
    %c0_33 = arith.constant 0 : index
    %71 = vector.load %arg6[%c0_32, %c0_33] : memref<16x1xf32, #tpu.memory_space<vmem>>, vector<16x1xf32>
    %72 = vector.broadcast %71 : vector<16x1xf32> to vector<16x128xf32>
    %73 = arith.addf %70, %72 : vector<16x128xf32>
    %cst_34 = arith.constant 0.000000e+00 : f32
    %74 = vector.broadcast %cst_34 : f32 to vector<16x128xf32>
    %75 = arith.maximumf %73, %74 : vector<16x128xf32>
    %c0_35 = arith.constant 0 : index
    %c0_36 = arith.constant 0 : index
    %76 = vector.load %arg7[%c0_35, %c0_36] : memref<16x128xf32, #tpu.memory_space<vmem>>, vector<16x128xf32>
    tpu.vector_store %arg7[%c0_35, %c0_36], %75 {strides = array<i32>} : memref<16x128xf32, #tpu.memory_space<vmem>>, vector<16x128xf32>,
    return
  }
  func.func @transform_0(%arg0: i32) -> (i32, i32) {
    %c0_i32 = arith.constant 0 : i32
    %c0_i32_0 = arith.constant 0 : i32
    return %c0_i32, %arg0 : i32, i32
  }
  func.func @transform_1(%arg0: i32) -> (i32, i32) {
    %c0_i32 = arith.constant 0 : i32
    %c0_i32_0 = arith.constant 0 : i32
    %c0_i32_1 = arith.constant 0 : i32
    return %c0_i32, %c0_i32_0 : i32, i32
  }
  func.func @transform_2(%arg0: i32) -> (i32, i32) {
    %c0_i32 = arith.constant 0 : i32
    %c0_i32_0 = arith.constant 0 : i32
    %c0_i32_1 = arith.constant 0 : i32
    return %c0_i32, %c0_i32_0 : i32, i32
  }
  func.func @transform_3(%arg0: i32) -> (i32, i32) {
    %c0_i32 = arith.constant 0 : i32
    %c0_i32_0 = arith.constant 0 : i32
    %c0_i32_1 = arith.constant 0 : i32
    return %c0_i32, %c0_i32_0 : i32, i32
  }
  func.func @transform_4(%arg0: i32) -> (i32, i32) {
    %c0_i32 = arith.constant 0 : i32
    %c0_i32_0 = arith.constant 0 : i32
    %c0_i32_1 = arith.constant 0 : i32
    return %c0_i32, %c0_i32_0 : i32, i32
  }
  func.func @transform_5(%arg0: i32) -> (i32, i32) {
    %c0_i32 = arith.constant 0 : i32
    %c0_i32_0 = arith.constant 0 : i32
    %c0_i32_1 = arith.constant 0 : i32
    return %c0_i32, %c0_i32_0 : i32, i32
  }
  func.func @transform_6(%arg0: i32) -> (i32, i32) {
    %c0_i32 = arith.constant 0 : i32
    %c0_i32_0 = arith.constant 0 : i32
    return %c0_i32, %arg0 : i32, i32
  }
}

</mosaic_0001>

<llo_original>
// kernel: tpu_custom_call.1
$region0: #{tpu_custom_call.1}
  #allocation0 [shape = 'u32[]', space=smem, size = 0x4, offset = 0x4, fixed_abs, tag = 'smem constant byte address 0x4 - core index']
  #allocation1 [shape = 'u32[72,128]{1,0:T(1,128)}', space=vmem, size = 0x9000, scoped, tag = 'internal scratch']
  %s0 = inlined_call_operand.vmem [shape: f32[8,256], index: 0, kind: input, shape index: {}]
  %s1 = inlined_call_operand.vmem [shape: f32[1,128], index: 1, kind: input, shape index: {}]
  %s2 = inlined_call_operand.vmem [shape: f32[256,8], index: 2, kind: input, shape index: {}]
  %s3 = inlined_call_operand.vmem [shape: f32[32,1], index: 3, kind: input, shape index: {}]
  %s4 = inlined_call_operand.vmem [shape: f32[128,32], index: 4, kind: input, shape index: {}]
  %s5 = inlined_call_operand.vmem [shape: f32[16,1], index: 5, kind: input, shape index: {}]
  %s6 = inlined_call_operand.hbm [shape: f32[16,256], index: 6, kind: output, shape index: {}]
  %s7 = sld [smem:[#allocation0]]
  $region57: #{tpu_custom_call.1} parent=0
    _
  %s9 = ssub.s32 1, %s7
  %s10 = scalar_select 0, %s9, %s7
  $region1: #{tpu_custom_call.1} parent=0
    #allocation2 [shape = 'u8[16384]{0}', space=vmem, size = 0x4000, scoped, tag = 'output window, operand 0']
    #allocation3 [shape = 's32[2]{0}', space=sflag, size = 0x8, scoped, tag = 'scoped memory for tpu_custom_call.1']
    %11 = vsyncpa [#allocation3], 0
    %s12 = scalar_lea.sflag [#allocation3], 1
    %13 = vsyncpa %s12, 0
    loop: start=0, step=1, limit=4
    $region2: #{tpu_custom_call.1} parent=1 // loop_pre_header
      _
    $region3: #{tpu_custom_call.1} parent=1 // loop_header
      %s15 = sphi 0, %s19
      %p16 = scmp.ge.s32.totalorder %s15, 4
      %s25 = sphi 0, %s27
      %s28 = sphi 0, %s25
      %s29 = sphi 0, %s28
      %s45 = sphi 0, %s29
      %s49 = sphi 0, %s49
      %s51 = sphi 0, %s49
      %s52 = sphi 0, %s51
      %s66 = sphi 0, %s52
      %s70 = sphi 0, %s70
      %s72 = sphi 0, %s70
      %s73 = sphi 0, %s72
      %s87 = sphi 0, %s73
      %s91 = sphi 0, %s91
      %s93 = sphi 0, %s91
      %s94 = sphi 0, %s93
      %s108 = sphi 0, %s94
      %s112 = sphi 0, %s112
      %s114 = sphi 0, %s112
      %s115 = sphi 0, %s114
      %s129 = sphi 0, %s115
      %s133 = sphi 0, %s133
      %s135 = sphi 0, %s133
      %s136 = sphi 0, %s135
      %s150 = sphi 0, %s136
      %s156 = sphi 0, %s158
      %s159 = sphi 0, %s156
      %s160 = sphi 0, %s159
      %s176 = sphi 0, %s160
    $region4: #{tpu_custom_call.1} parent=1 // loop_header_branch
      %18 = sbr.rel (%p16) target = $region8
    $region5: #{tpu_custom_call.1} parent=1 // loop_body
      %s20 = ssub.s32 %s15, 1
      %s21 = ssub.s32 %s15, 2
      %s22 = sadd.s32 %s15, 1
      %s23 = ssub.s32 %s15, %s22
      %p24 = scmp.eq.s32.totalorder %s23, 0
      %s26 = sadd.s32 %s25, 1
      %s27 = scalar_select %p24, %s25, %s26
      %p30 = pneg %p24
      %p31 = scmp.eq.s32.totalorder %s15, 1
      %p32 = por %p30, %p31
      %p33 = scmp.ne.s32.totalorder %s25, %s28
      %p34 = scmp.eq.s32.totalorder %s15, 0
      %p35 = por %p33, %p34
      %p36 = scmp.ne.s32.totalorder %s25, %s28
      %p37 = scmp.eq.s32.totalorder %s20, 1
      %p38 = por %p36, %p37
      %p39 = scmp.ne.s32.totalorder %s28, %s29
      %p40 = scmp.eq.s32.totalorder %s20, 0
      %p41 = por %p39, %p40
      %p42 = scmp.ne.s32.totalorder %s28, %s29
      %p43 = scmp.eq.s32.totalorder %s21, 1
      %p44 = por %p42, %p43
      %p46 = scmp.ne.s32.totalorder %s29, %s45
      %p47 = scmp.eq.s32.totalorder %s21, 0
      %p48 = por %p46, %p47
      %s50 = sadd.s32 %s49, 1
      %p53 = scmp.eq.s32.totalorder %s15, 1
      %p54 = scmp.ne.s32.totalorder %s49, %s51
      %p55 = scmp.eq.s32.totalorder %s15, 0
      %p56 = por %p54, %p55
      %p57 = scmp.ne.s32.totalorder %s49, %s51
      %p58 = scmp.eq.s32.totalorder %s20, 1
      %p59 = por %p57, %p58
      %p60 = scmp.ne.s32.totalorder %s51, %s52
      %p61 = scmp.eq.s32.totalorder %s20, 0
      %p62 = por %p60, %p61
      %p63 = scmp.ne.s32.totalorder %s51, %s52
      %p64 = scmp.eq.s32.totalorder %s21, 1
      %p65 = por %p63, %p64
      %p67 = scmp.ne.s32.totalorder %s52, %s66
      %p68 = scmp.eq.s32.totalorder %s21, 0
      %p69 = por %p67, %p68
      %s71 = sadd.s32 %s70, 1
      %p74 = scmp.eq.s32.totalorder %s15, 1
      %p75 = scmp.ne.s32.totalorder %s70, %s72
      %p76 = scmp.eq.s32.totalorder %s15, 0
      %p77 = por %p75, %p76
      %p78 = scmp.ne.s32.totalorder %s70, %s72
      %p79 = scmp.eq.s32.totalorder %s20, 1
      %p80 = por %p78, %p79
      %p81 = scmp.ne.s32.totalorder %s72, %s73
      %p82 = scmp.eq.s32.totalorder %s20, 0
      %p83 = por %p81, %p82
      %p84 = scmp.ne.s32.totalorder %s72, %s73
      %p85 = scmp.eq.s32.totalorder %s21, 1
      %p86 = por %p84, %p85
      %p88 = scmp.ne.s32.totalorder %s73, %s87
      %p89 = scmp.eq.s32.totalorder %s21, 0
      %p90 = por %p88, %p89
      %s92 = sadd.s32 %s91, 1
      %p95 = scmp.eq.s32.totalorder %s15, 1
      %p96 = scmp.ne.s32.totalorder %s91, %s93
      %p97 = scmp.eq.s32.totalorder %s15, 0
      %p98 = por %p96, %p97
      %p99 = scmp.ne.s32.totalorder %s91, %s93
      %p100 = scmp.eq.s32.totalorder %s20, 1
      %p101 = por %p99, %p100
      %p102 = scmp.ne.s32.totalorder %s93, %s94
      %p103 = scmp.eq.s32.totalorder %s20, 0
      %p104 = por %p102, %p103
      %p105 = scmp.ne.s32.totalorder %s93, %s94
      %p106 = scmp.eq.s32.totalorder %s21, 1
      %p107 = por %p105, %p106
      %p109 = scmp.ne.s32.totalorder %s94, %s108
      %p110 = scmp.eq.s32.totalorder %s21, 0
      %p111 = por %p109, %p110
      %s113 = sadd.s32 %s112, 1
      %p116 = scmp.eq.s32.totalorder %s15, 1
      %p117 = scmp.ne.s32.totalorder %s112, %s114
      %p118 = scmp.eq.s32.totalorder %s15, 0
      %p119 = por %p117, %p118
      %p120 = scmp.ne.s32.totalorder %s112, %s114
      %p121 = scmp.eq.s32.totalorder %s20, 1
      %p122 = por %p120, %p121
      %p123 = scmp.ne.s32.totalorder %s114, %s115
      %p124 = scmp.eq.s32.totalorder %s20, 0
      %p125 = por %p123, %p124
      %p126 = scmp.ne.s32.totalorder %s114, %s115
      %p127 = scmp.eq.s32.totalorder %s21, 1
      %p128 = por %p126, %p127
      %p130 = scmp.ne.s32.totalorder %s115, %s129
      %p131 = scmp.eq.s32.totalorder %s21, 0
      %p132 = por %p130, %p131
      %s134 = sadd.s32 %s133, 1
      %p137 = scmp.eq.s32.totalorder %s15, 1
      %p138 = scmp.ne.s32.totalorder %s133, %s135
      %p139 = scmp.eq.s32.totalorder %s15, 0
      %p140 = por %p138, %p139
      %p141 = scmp.ne.s32.totalorder %s133, %s135
      %p142 = scmp.eq.s32.totalorder %s20, 1
      %p143 = por %p141, %p142
      %p144 = scmp.ne.s32.totalorder %s135, %s136
      %p145 = scmp.eq.s32.totalorder %s20, 0
      %p146 = por %p144, %p145
      %p147 = scmp.ne.s32.totalorder %s135, %s136
      %p148 = scmp.eq.s32.totalorder %s21, 1
      %p149 = por %p147, %p148
      %p151 = scmp.ne.s32.totalorder %s136, %s150
      %p152 = scmp.eq.s32.totalorder %s21, 0
      %p153 = por %p151, %p152
      %s154 = ssub.s32 %s15, %s22
      %p155 = scmp.eq.s32.totalorder %s154, 0
      %s157 = sadd.s32 %s156, 1
      %s158 = scalar_select %p155, %s156, %s157
      %p161 = pneg %p155
      %p162 = scmp.eq.s32.totalorder %s15, 1
      %p163 = por %p161, %p162
      %p164 = scmp.ne.s32.totalorder %s156, %s159
      %p165 = scmp.eq.s32.totalorder %s15, 0
      %p166 = por %p164, %p165
      %p167 = scmp.ne.s32.totalorder %s156, %s159
      %p168 = scmp.eq.s32.totalorder %s20, 1
      %p169 = por %p167, %p168
      %p170 = scmp.ne.s32.totalorder %s159, %s160
      %p171 = scmp.eq.s32.totalorder %s20, 0
      %p172 = por %p170, %p171
      %p173 = scmp.ne.s32.totalorder %s159, %s160
      %p174 = scmp.eq.s32.totalorder %s21, 1
      %p175 = por %p173, %p174
      %p177 = scmp.ne.s32.totalorder %s160, %s176
      %p178 = scmp.eq.s32.totalorder %s21, 0
      %p179 = por %p177, %p178
      %p180 = scmp.le.s32.totalorder 1, %s15
      %p181 = scmp.lt.s32.totalorder %s15, 3
      %p182 = pnand %p180, %p181
      %p183 = pneg %p182
      // Predicated region
      $region9: #{tpu_custom_call.1} parent=5 // pred_check
        _
      $region10: #{tpu_custom_call.1} parent=5 // pred_check_branch
        %185 = sbr.rel (%p182) target = $region12
      $region11: #{tpu_custom_call.1} parent=5 // pred_region
        %s186 = ssub.s32 %s15, 1
        // Predicated region
        $region13: #{tpu_custom_call.1} parent=11 // pred_check
          %p187 = pneg %p62
        $region14: #{tpu_custom_call.1} parent=11 // pred_check_branch
          %189 = sbr.rel (%p187) target = $region16
        $region15: #{tpu_custom_call.1} parent=11 // pred_region
          _
        $region16: #{tpu_custom_call.1} parent=11 // pred_fallthru
          _
        // Predicated region
        $region17: #{tpu_custom_call.1} parent=11 // pred_check
          %p190 = pneg %p83
        $region18: #{tpu_custom_call.1} parent=11 // pred_check_branch
          %192 = sbr.rel (%p190) target = $region20
        $region19: #{tpu_custom_call.1} parent=11 // pred_region
          _
        $region20: #{tpu_custom_call.1} parent=11 // pred_fallthru
          _
        // Predicated region
        $region21: #{tpu_custom_call.1} parent=11 // pred_check
          %p193 = pneg %p104
        $region22: #{tpu_custom_call.1} parent=11 // pred_check_branch
          %195 = sbr.rel (%p193) target = $region24
        $region23: #{tpu_custom_call.1} parent=11 // pred_region
          _
        $region24: #{tpu_custom_call.1} parent=11 // pred_fallthru
          _
        // Predicated region
        $region25: #{tpu_custom_call.1} parent=11 // pred_check
          %p196 = pneg %p125
        $region26: #{tpu_custom_call.1} parent=11 // pred_check_branch
          %198 = sbr.rel (%p196) target = $region28
        $region27: #{tpu_custom_call.1} parent=11 // pred_region
          _
        $region28: #{tpu_custom_call.1} parent=11 // pred_fallthru
          _
        // Predicated region
        $region29: #{tpu_custom_call.1} parent=11 // pred_check
          %p199 = pneg %p146
        $region30: #{tpu_custom_call.1} parent=11 // pred_check_branch
          %201 = sbr.rel (%p199) target = $region32
        $region31: #{tpu_custom_call.1} parent=11 // pred_region
          _
        $region32: #{tpu_custom_call.1} parent=11 // pred_fallthru
          _
      $region12: #{tpu_custom_call.1} parent=5 // pred_fallthru
        _
      %p202 = scmp.lt.s32.totalorder %s15, 2
      // Predicated region
      $region33: #{tpu_custom_call.1} parent=5 // pred_check
        %p203 = pneg %p202
      $region34: #{tpu_custom_call.1} parent=5 // pred_check_branch
        %205 = sbr.rel (%p203) target = $region36
      $region35: #{tpu_custom_call.1} parent=5 // pred_region
        // Predicated region
        $region37: #{tpu_custom_call.1} parent=35 // pred_check
          %p206 = pneg %p35
        $region38: #{tpu_custom_call.1} parent=35 // pred_check_branch
          %208 = sbr.rel (%p206) target = $region40
        $region39: #{tpu_custom_call.1} parent=35 // pred_region
          %p209 = scmp.lt.s32.totalorder %s15, 1
          %s210 = scalar_select %p209, %s15, 1
          %s211 = smul.addr %s210, 8
          %s212 = scalar_lea.vmem %s0, %s211
        $region40: #{tpu_custom_call.1} parent=35 // pred_fallthru
          _
      $region36: #{tpu_custom_call.1} parent=5 // pred_fallthru
        _
      %p213 = scmp.le.s32.totalorder 1, %s15
      %p214 = scmp.lt.s32.totalorder %s15, 3
      %p215 = pnand %p213, %p214
      %p216 = pneg %p215
      // Predicated region
      $region41: #{tpu_custom_call.1} parent=5 // pred_check
        _
      $region42: #{tpu_custom_call.1} parent=5 // pred_check_branch
        %218 = sbr.rel (%p215) target = $region44
      $region43: #{tpu_custom_call.1} parent=5 // pred_region
        %s219 = ssub.s32 %s15, 1
        %p220 = scmp.lt.s32.totalorder %s20, 1
        %s221 = scalar_select %p220, %s20, 1
        %s222 = smul.addr %s221, 8
        %s223 = scalar_lea.vmem %s0, %s222
        %p224 = pneg %p41
        %p225 = pneg %p38
        %p226 = pneg %p62
        %p227 = pneg %p59
        %p228 = pneg %p83
        %p229 = pneg %p80
        %p230 = pneg %p104
        %p231 = pneg %p101
        %p232 = pneg %p125
        %p233 = pneg %p122
        %p234 = pneg %p146
        %p235 = pneg %p143
        %p236 = pneg %p172
        %p237 = pneg %p169
        %s238 = sand.u32 %s159, 1
        %s239 = scalar_lea.sflag [#allocation3], %s238
        %s240 = sand.u32 %s159, 1
        %s241 = smul.addr %s240, 16
        %s242 = scalar_lea.vmem [#allocation2], %s241
        %p243 = scmp.lt.s32.totalorder %s20, 1
        %s244 = scalar_select %p243, %s20, 1
        %s245 = smul.addr %s244, 8
        %s246 = scalar_lea.vmem %s0, %s245
        %v247 = vld [vmem:[%s246] sm:$0xff]
        %v248 = vld [vmem:[%s2] sm:$0xff]
        %v249 = vld [vmem:[%s2 + $0x8] sm:$0xff]
        %v250 = vld [vmem:[%s2 + $0x10] sm:$0xff]
        %v251 = vld [vmem:[%s2 + $0x18] sm:$0xff]
        %v252 = vld [vmem:[%s2 + $0x20] sm:$0xff]
        %v253 = vld [vmem:[%s2 + $0x28] sm:$0xff]
        %v254 = vld [vmem:[%s2 + $0x30] sm:$0xff]
        %v255 = vld [vmem:[%s2 + $0x38] sm:$0xff]
        %v256 = vld [vmem:[%s2 + $0x40] sm:$0xff]
        %v257 = vld [vmem:[%s2 + $0x48] sm:$0xff]
        %v258 = vld [vmem:[%s2 + $0x50] sm:$0xff]
        %v259 = vld [vmem:[%s2 + $0x58] sm:$0xff]
        %v260 = vld [vmem:[%s2 + $0x60] sm:$0xff]
        %v261 = vld [vmem:[%s2 + $0x68] sm:$0xff]
        %v262 = vld [vmem:[%s2 + $0x70] sm:$0xff]
        %v263 = vld [vmem:[%s2 + $0x78] sm:$0xff]
        %v264 = vld [vmem:[%s2 + $0x80] sm:$0xff]
        %v265 = vld [vmem:[%s2 + $0x88] sm:$0xff]
        %v266 = vld [vmem:[%s2 + $0x90] sm:$0xff]
        %v267 = vld [vmem:[%s2 + $0x98] sm:$0xff]
        %v268 = vld [vmem:[%s2 + $0xa0] sm:$0xff]
        %v269 = vld [vmem:[%s2 + $0xa8] sm:$0xff]
        %v270 = vld [vmem:[%s2 + $0xb0] sm:$0xff]
        %v271 = vld [vmem:[%s2 + $0xb8] sm:$0xff]
        %v272 = vld [vmem:[%s2 + $0xc0] sm:$0xff]
        %v273 = vld [vmem:[%s2 + $0xc8] sm:$0xff]
        %v274 = vld [vmem:[%s2 + $0xd0] sm:$0xff]
        %v275 = vld [vmem:[%s2 + $0xd8] sm:$0xff]
        %v276 = vld [vmem:[%s2 + $0xe0] sm:$0xff]
        %v277 = vld [vmem:[%s2 + $0xe8] sm:$0xff]
        %v278 = vld [vmem:[%s2 + $0xf0] sm:$0xff]
        %v279 = vld [vmem:[%s2 + $0xf8] sm:$0xff]
        %v280 = vld [vmem:[%s4] sm:$0xff]
        %v281 = vld [vmem:[%s4 + $0x8] sm:$0xff]
        %v282 = vld [vmem:[%s4 + $0x10] sm:$0xff]
        %v283 = vld [vmem:[%s4 + $0x18] sm:$0xff]
        %v284 = vld [vmem:[%s4 + $0x20] sm:$0xff]
        %v285 = vld [vmem:[%s4 + $0x28] sm:$0xff]
        %v286 = vld [vmem:[%s4 + $0x30] sm:$0xff]
        %v287 = vld [vmem:[%s4 + $0x38] sm:$0xff]
        %v288 = vld [vmem:[%s4 + $0x40] sm:$0xff]
        %v289 = vld [vmem:[%s4 + $0x48] sm:$0xff]
        %v290 = vld [vmem:[%s4 + $0x50] sm:$0xff]
        %v291 = vld [vmem:[%s4 + $0x58] sm:$0xff]
        %v292 = vld [vmem:[%s4 + $0x60] sm:$0xff]
        %v293 = vld [vmem:[%s4 + $0x68] sm:$0xff]
        %v294 = vld [vmem:[%s4 + $0x70] sm:$0xff]
        %v295 = vld [vmem:[%s4 + $0x78] sm:$0xff]
        %296 = vrot.lane.b32.xlu0 %v247, 127
        %v297 = vpop.permute.xlu0 %296
        %vm298 = vcmask 64512
        %v300 = vsel %vm298, %v252, 0
        %v303 = vsel %vm298, %v253, 0
        %v306 = vsel %vm298, %v254, 0
        %v309 = vsel %vm298, %v255, 0
        %311 = vmatpush.msra.mxu0 0.0
        %312 = vmatpush.msra.mxu0 0.0
        %313 = vmatpush.msra.mxu0 0.0
        %314 = vmatpush.msra.mxu0 0.0
        %315 = vmatpush.msra.mxu0 0.0
        %316 = vmatpush.msra.mxu0 0.0
        %317 = vmatpush.msra.mxu0 0.0
        %318 = vmatpush.msra.mxu0 0.0
        %319 = vmatpush.msra.mxu0 0.0
        %320 = vmatpush.msra.mxu0 0.0
        %321 = vmatpush.msra.mxu0 0.0
        %322 = vmatpush.msra.mxu0 0.0
        %323 = vmatpush.msra.mxu0 0.0
        %324 = vmatpush.msra.mxu0 0.0
        %325 = vmatpush.msra.mxu0 0.0
        %326 = vmatpush.msra.mxu0 %v297
        %327 = vmatmul.f32.gmra.mxu0 %v300
        %v328 = vpop.f32.mrf.mxu0
        %v329 = vadd.f32 0.0, %v328
        %330 = vmatmul.f32.gmra.mxu0 %v303
        %v331 = vpop.f32.mrf.mxu0
        %v332 = vadd.f32 0.0, %v331
        %333 = vmatmul.f32.gmra.mxu0 %v306
        %v334 = vpop.f32.mrf.mxu0
        %v335 = vadd.f32 0.0, %v334
        %336 = vmatmul.f32.gmra.mxu0 %v309
        %v337 = vpop.f32.mrf.mxu0
        %v338 = vadd.f32 0.0, %v337
        %339 = vdwg.mxu0
        %v341 = vsel %vm298, %v248, 0
        %v344 = vsel %vm298, %v249, 0
        %v347 = vsel %vm298, %v250, 0
        %v350 = vsel %vm298, %v251, 0
        %352 = vmatpush.msra.mxu0 0.0
        %353 = vmatpush.msra.mxu0 0.0
        %354 = vmatpush.msra.mxu0 0.0
        %355 = vmatpush.msra.mxu0 0.0
        %356 = vmatpush.msra.mxu0 0.0
        %357 = vmatpush.msra.mxu0 0.0
        %358 = vmatpush.msra.mxu0 0.0
        %359 = vmatpush.msra.mxu0 0.0
        %360 = vmatpush.msra.mxu0 0.0
        %361 = vmatpush.msra.mxu0 0.0
        %362 = vmatpush.msra.mxu0 0.0
        %363 = vmatpush.msra.mxu0 0.0
        %364 = vmatpush.msra.mxu0 0.0
        %365 = vmatpush.msra.mxu0 0.0
        %366 = vmatpush.msra.mxu0 0.0
        %367 = vmatpush.msra.mxu0 %v247
        %368 = vmatmul.f32.gmra.mxu0 %v341
        %v369 = vpop.f32.mrf.mxu0
        %v370 = vadd.f32 %v329, %v369
        %371 = vmatmul.f32.gmra.mxu0 %v344
        %v372 = vpop.f32.mrf.mxu0
        %v373 = vadd.f32 %v332, %v372
        %374 = vmatmul.f32.gmra.mxu0 %v347
        %v375 = vpop.f32.mrf.mxu0
        %v376 = vadd.f32 %v335, %v375
        %377 = vmatmul.f32.gmra.mxu0 %v350
        %v378 = vpop.f32.mrf.mxu0
        %v379 = vadd.f32 %v338, %v378
        %380 = vdwg.mxu0
        %381 = vrot.lane.b32.xlu0 %v247, 126
        %v382 = vpop.permute.xlu0 %381
        %v384 = vsel %vm298, %v256, 0
        %v387 = vsel %vm298, %v257, 0
        %v390 = vsel %vm298, %v258, 0
        %v393 = vsel %vm298, %v259, 0
        %395 = vmatpush.msra.mxu0 0.0
        %396 = vmatpush.msra.mxu0 0.0
        %397 = vmatpush.msra.mxu0 0.0
        %398 = vmatpush.msra.mxu0 0.0
        %399 = vmatpush.msra.mxu0 0.0
        %400 = vmatpush.msra.mxu0 0.0
        %401 = vmatpush.msra.mxu0 0.0
        %402 = vmatpush.msra.mxu0 0.0
        %403 = vmatpush.msra.mxu0 0.0
        %404 = vmatpush.msra.mxu0 0.0
        %405 = vmatpush.msra.mxu0 0.0
        %406 = vmatpush.msra.mxu0 0.0
        %407 = vmatpush.msra.mxu0 0.0
        %408 = vmatpush.msra.mxu0 0.0
        %409 = vmatpush.msra.mxu0 0.0
        %410 = vmatpush.msra.mxu0 %v382
        %411 = vmatmul.f32.gmra.mxu0 %v384
        %v412 = vpop.f32.mrf.mxu0
        %v413 = vadd.f32 0.0, %v412
        %414 = vmatmul.f32.gmra.mxu0 %v387
        %v415 = vpop.f32.mrf.mxu0
        %v416 = vadd.f32 0.0, %v415
        %417 = vmatmul.f32.gmra.mxu0 %v390
        %v418 = vpop.f32.mrf.mxu0
        %v419 = vadd.f32 0.0, %v418
        %420 = vmatmul.f32.gmra.mxu0 %v393
        %v421 = vpop.f32.mrf.mxu0
        %v422 = vadd.f32 0.0, %v421
        %423 = vdwg.mxu0
        %v424 = vadd.f32 %v370, %v413
        %v425 = vadd.f32 %v373, %v416
        %v426 = vadd.f32 %v376, %v419
        %v427 = vadd.f32 %v379, %v422
        %428 = vrot.lane.b32.xlu0 %v247, 125
        %v429 = vpop.permute.xlu0 %428
        %v431 = vsel %vm298, %v260, 0
        %v434 = vsel %vm298, %v261, 0
        %v437 = vsel %vm298, %v262, 0
        %v440 = vsel %vm298, %v263, 0
        %442 = vmatpush.msra.mxu0 0.0
        %443 = vmatpush.msra.mxu0 0.0
        %444 = vmatpush.msra.mxu0 0.0
        %445 = vmatpush.msra.mxu0 0.0
        %446 = vmatpush.msra.mxu0 0.0
        %447 = vmatpush.msra.mxu0 0.0
        %448 = vmatpush.msra.mxu0 0.0
        %449 = vmatpush.msra.mxu0 0.0
        %450 = vmatpush.msra.mxu0 0.0
        %451 = vmatpush.msra.mxu0 0.0
        %452 = vmatpush.msra.mxu0 0.0
        %453 = vmatpush.msra.mxu0 0.0
        %454 = vmatpush.msra.mxu0 0.0
        %455 = vmatpush.msra.mxu0 0.0
        %456 = vmatpush.msra.mxu0 0.0
        %457 = vmatpush.msra.mxu0 %v429
        %458 = vmatmul.f32.gmra.mxu0 %v431
        %v459 = vpop.f32.mrf.mxu0
        %v460 = vadd.f32 0.0, %v459
        %461 = vmatmul.f32.gmra.mxu0 %v434
        %v462 = vpop.f32.mrf.mxu0
        %v463 = vadd.f32 0.0, %v462
        %464 = vmatmul.f32.gmra.mxu0 %v437
        %v465 = vpop.f32.mrf.mxu0
        %v466 = vadd.f32 0.0, %v465
        %467 = vmatmul.f32.gmra.mxu0 %v440
        %v468 = vpop.f32.mrf.mxu0
        %v469 = vadd.f32 0.0, %v468
        %470 = vdwg.mxu0
        %v471 = vadd.f32 %v424, %v460
        %v472 = vadd.f32 %v425, %v463
        %v473 = vadd.f32 %v426, %v466
        %v474 = vadd.f32 %v427, %v469
        %475 = vrot.lane.b32.xlu0 %v247, 124
        %v476 = vpop.permute.xlu0 %475
        %v478 = vsel %vm298, %v264, 0
        %v481 = vsel %vm298, %v265, 0
        %v484 = vsel %vm298, %v266, 0
        %v487 = vsel %vm298, %v267, 0
        %489 = vmatpush.msra.mxu0 0.0
        %490 = vmatpush.msra.mxu0 0.0
        %491 = vmatpush.msra.mxu0 0.0
        %492 = vmatpush.msra.mxu0 0.0
        %493 = vmatpush.msra.mxu0 0.0
        %494 = vmatpush.msra.mxu0 0.0
        %495 = vmatpush.msra.mxu0 0.0
        %496 = vmatpush.msra.mxu0 0.0
        %497 = vmatpush.msra.mxu0 0.0
        %498 = vmatpush.msra.mxu0 0.0
        %499 = vmatpush.msra.mxu0 0.0
        %500 = vmatpush.msra.mxu0 0.0
        %501 = vmatpush.msra.mxu0 0.0
        %502 = vmatpush.msra.mxu0 0.0
        %503 = vmatpush.msra.mxu0 0.0
        %504 = vmatpush.msra.mxu0 %v476
        %505 = vmatmul.f32.gmra.mxu0 %v478
        %v506 = vpop.f32.mrf.mxu0
        %v507 = vadd.f32 0.0, %v506
        %508 = vmatmul.f32.gmra.mxu0 %v481
        %v509 = vpop.f32.mrf.mxu0
        %v510 = vadd.f32 0.0, %v509
        %511 = vmatmul.f32.gmra.mxu0 %v484
        %v512 = vpop.f32.mrf.mxu0
        %v513 = vadd.f32 0.0, %v512
        %514 = vmatmul.f32.gmra.mxu0 %v487
        %v515 = vpop.f32.mrf.mxu0
        %v516 = vadd.f32 0.0, %v515
        %517 = vdwg.mxu0
        %v518 = vadd.f32 %v471, %v507
        %v519 = vadd.f32 %v472, %v510
        %v520 = vadd.f32 %v473, %v513
        %v521 = vadd.f32 %v474, %v516
        %522 = vrot.lane.b32.xlu0 %v247, 123
        %v523 = vpop.permute.xlu0 %522
        %v525 = vsel %vm298, %v268, 0
        %v528 = vsel %vm298, %v269, 0
        %v531 = vsel %vm298, %v270, 0
        %v534 = vsel %vm298, %v271, 0
        %536 = vmatpush.msra.mxu0 0.0
        %537 = vmatpush.msra.mxu0 0.0
        %538 = vmatpush.msra.mxu0 0.0
        %539 = vmatpush.msra.mxu0 0.0
        %540 = vmatpush.msra.mxu0 0.0
        %541 = vmatpush.msra.mxu0 0.0
        %542 = vmatpush.msra.mxu0 0.0
        %543 = vmatpush.msra.mxu0 0.0
        %544 = vmatpush.msra.mxu0 0.0
        %545 = vmatpush.msra.mxu0 0.0
        %546 = vmatpush.msra.mxu0 0.0
        %547 = vmatpush.msra.mxu0 0.0
        %548 = vmatpush.msra.mxu0 0.0
        %549 = vmatpush.msra.mxu0 0.0
        %550 = vmatpush.msra.mxu0 0.0
        %551 = vmatpush.msra.mxu0 %v523
        %552 = vmatmul.f32.gmra.mxu0 %v525
        %v553 = vpop.f32.mrf.mxu0
        %v554 = vadd.f32 0.0, %v553
        %555 = vmatmul.f32.gmra.mxu0 %v528
        %v556 = vpop.f32.mrf.mxu0
        %v557 = vadd.f32 0.0, %v556
        %558 = vmatmul.f32.gmra.mxu0 %v531
        %v559 = vpop.f32.mrf.mxu0
        %v560 = vadd.f32 0.0, %v559
        %561 = vmatmul.f32.gmra.mxu0 %v534
        %v562 = vpop.f32.mrf.mxu0
        %v563 = vadd.f32 0.0, %v562
        %564 = vdwg.mxu0
        %v565 = vadd.f32 %v518, %v554
        %v566 = vadd.f32 %v519, %v557
        %v567 = vadd.f32 %v520, %v560
        %v568 = vadd.f32 %v521, %v563
        %569 = vrot.lane.b32.xlu0 %v247, 122
        %v570 = vpop.permute.xlu0 %569
        %v572 = vsel %vm298, %v272, 0
        %v575 = vsel %vm298, %v273, 0
        %v578 = vsel %vm298, %v274, 0
        %v581 = vsel %vm298, %v275, 0
        %583 = vmatpush.msra.mxu0 0.0
        %584 = vmatpush.msra.mxu0 0.0
        %585 = vmatpush.msra.mxu0 0.0
        %586 = vmatpush.msra.mxu0 0.0
        %587 = vmatpush.msra.mxu0 0.0
        %588 = vmatpush.msra.mxu0 0.0
        %589 = vmatpush.msra.mxu0 0.0
        %590 = vmatpush.msra.mxu0 0.0
        %591 = vmatpush.msra.mxu0 0.0
        %592 = vmatpush.msra.mxu0 0.0
        %593 = vmatpush.msra.mxu0 0.0
        %594 = vmatpush.msra.mxu0 0.0
        %595 = vmatpush.msra.mxu0 0.0
        %596 = vmatpush.msra.mxu0 0.0
        %597 = vmatpush.msra.mxu0 0.0
        %598 = vmatpush.msra.mxu0 %v570
        %599 = vmatmul.f32.gmra.mxu0 %v572
        %v600 = vpop.f32.mrf.mxu0
        %v601 = vadd.f32 0.0, %v600
        %602 = vmatmul.f32.gmra.mxu0 %v575
        %v603 = vpop.f32.mrf.mxu0
        %v604 = vadd.f32 0.0, %v603
        %605 = vmatmul.f32.gmra.mxu0 %v578
        %v606 = vpop.f32.mrf.mxu0
        %v607 = vadd.f32 0.0, %v606
        %608 = vmatmul.f32.gmra.mxu0 %v581
        %v609 = vpop.f32.mrf.mxu0
        %v610 = vadd.f32 0.0, %v609
        %611 = vdwg.mxu0
        %v612 = vadd.f32 %v565, %v601
        %v613 = vadd.f32 %v566, %v604
        %v614 = vadd.f32 %v567, %v607
        %v615 = vadd.f32 %v568, %v610
        %616 = vrot.lane.b32.xlu0 %v247, 121
        %v617 = vpop.permute.xlu0 %616
        %v619 = vsel %vm298, %v276, 0
        %v622 = vsel %vm298, %v277, 0
        %v625 = vsel %vm298, %v278, 0
        %v628 = vsel %vm298, %v279, 0
        %630 = vmatpush.msra.mxu0 0.0
        %631 = vmatpush.msra.mxu0 0.0
        %632 = vmatpush.msra.mxu0 0.0
        %633 = vmatpush.msra.mxu0 0.0
        %634 = vmatpush.msra.mxu0 0.0
        %635 = vmatpush.msra.mxu0 0.0
        %636 = vmatpush.msra.mxu0 0.0
        %637 = vmatpush.msra.mxu0 0.0
        %638 = vmatpush.msra.mxu0 0.0
        %639 = vmatpush.msra.mxu0 0.0
        %640 = vmatpush.msra.mxu0 0.0
        %641 = vmatpush.msra.mxu0 0.0
        %642 = vmatpush.msra.mxu0 0.0
        %643 = vmatpush.msra.mxu0 0.0
        %644 = vmatpush.msra.mxu0 0.0
        %645 = vmatpush.msra.mxu0 %v617
        %646 = vmatmul.f32.gmra.mxu0 %v619
        %v647 = vpop.f32.mrf.mxu0
        %v648 = vadd.f32 0.0, %v647
        %649 = vmatmul.f32.gmra.mxu0 %v622
        %v650 = vpop.f32.mrf.mxu0
        %v651 = vadd.f32 0.0, %v650
        %652 = vmatmul.f32.gmra.mxu0 %v625
        %v653 = vpop.f32.mrf.mxu0
        %v654 = vadd.f32 0.0, %v653
        %655 = vmatmul.f32.gmra.mxu0 %v628
        %v656 = vpop.f32.mrf.mxu0
        %v657 = vadd.f32 0.0, %v656
        %658 = vdwg.mxu0
        %v659 = vadd.f32 %v612, %v648
        %v660 = vadd.f32 %v613, %v651
        %v661 = vadd.f32 %v614, %v654
        %v662 = vadd.f32 %v615, %v657
        %v663 = vld [vmem:[%s3] sm:$0xff]
        %v664 = vld [vmem:[%s3 + $0x8] sm:$0xff]
        %v665 = vld [vmem:[%s3 + $0x10] sm:$0xff]
        %v666 = vld [vmem:[%s3 + $0x18] sm:$0xff]
        %668 = vset.pattern.permute.xlu0 0
        %669 = vperm.xlu0 %668, %v663
        %v670 = vpop.permute.xlu0 %669
        %673 = vset.pattern.permute.xlu0 0
        %674 = vperm.xlu0 %673, %v664
        %v675 = vpop.permute.xlu0 %674
        %678 = vset.pattern.permute.xlu0 0
        %679 = vperm.xlu0 %678, %v665
        %v680 = vpop.permute.xlu0 %679
        %683 = vset.pattern.permute.xlu0 0
        %684 = vperm.xlu0 %683, %v666
        %v685 = vpop.permute.xlu0 %684
        %v687 = vadd.f32 %v659, %v670
        %v688 = vadd.f32 %v660, %v675
        %v689 = vadd.f32 %v661, %v680
        %v690 = vadd.f32 %v662, %v685
        %v691 = vmax.f32 %v687, 0.0
        %v692 = vmax.f32 %v688, 0.0
        %v693 = vmax.f32 %v689, 0.0
        %v694 = vmax.f32 %v690, 0.0
        %v695 = vld [vmem:[%s1] sm:$0x1]
        %v697 = vperm.slane %v695, 0
        %v699 = vmul.f32 %v691, %v697
        %v700 = vmul.f32 %v692, %v697
        %v701 = vmul.f32 %v693, %v697
        %v702 = vmul.f32 %v694, %v697
        %703 = vrot.lane.b32.xlu0 %v699, 127
        %v704 = vpop.permute.xlu0 %703
        %705 = vrot.lane.b32.xlu0 %v700, 127
        %v706 = vpop.permute.xlu0 %705
        %707 = vrot.lane.b32.xlu0 %v701, 127
        %v708 = vpop.permute.xlu0 %707
        %709 = vrot.lane.b32.xlu0 %v702, 127
        %v710 = vpop.permute.xlu0 %709
        %vm711 = vcmask 261120
        %v713 = vsel %vm711, %v282, 0
        %v716 = vsel %vm711, %v283, 0
        %718 = vmatpush.msra.mxu0 0.0
        %719 = vmatpush.msra.mxu0 0.0
        %720 = vmatpush.msra.mxu0 0.0
        %721 = vmatpush.msra.mxu0 0.0
        %722 = vmatpush.msra.mxu0 0.0
        %723 = vmatpush.msra.mxu0 0.0
        %724 = vmatpush.msra.mxu0 0.0
        %725 = vmatpush.msra.mxu0 0.0
        %726 = vmatpush.msra.mxu0 0.0
        %727 = vmatpush.msra.mxu0 0.0
        %728 = vmatpush.msra.mxu0 0.0
        %729 = vmatpush.msra.mxu0 0.0
        %730 = vmatpush.msra.mxu0 %v710
        %731 = vmatpush.msra.mxu0 %v708
        %732 = vmatpush.msra.mxu0 %v706
        %733 = vmatpush.msra.mxu0 %v704
        %734 = vmatmul.f32.gmra.mxu0 %v713
        %v735 = vpop.f32.mrf.mxu0
        %v736 = vadd.f32 0.0, %v735
        %737 = vmatmul.f32.gmra.mxu0 %v716
        %v738 = vpop.f32.mrf.mxu0
        %v739 = vadd.f32 0.0, %v738
        %740 = vdwg.mxu0
        %v742 = vsel %vm711, %v280, 0
        %v745 = vsel %vm711, %v281, 0
        %747 = vmatpush.msra.mxu0 0.0
        %748 = vmatpush.msra.mxu0 0.0
        %749 = vmatpush.msra.mxu0 0.0
        %750 = vmatpush.msra.mxu0 0.0
        %751 = vmatpush.msra.mxu0 0.0
        %752 = vmatpush.msra.mxu0 0.0
        %753 = vmatpush.msra.mxu0 0.0
        %754 = vmatpush.msra.mxu0 0.0
        %755 = vmatpush.msra.mxu0 0.0
        %756 = vmatpush.msra.mxu0 0.0
        %757 = vmatpush.msra.mxu0 0.0
        %758 = vmatpush.msra.mxu0 0.0
        %759 = vmatpush.msra.mxu0 %v702
        %760 = vmatpush.msra.mxu0 %v701
        %761 = vmatpush.msra.mxu0 %v700
        %762 = vmatpush.msra.mxu0 %v699
        %763 = vmatmul.f32.gmra.mxu0 %v742
        %v764 = vpop.f32.mrf.mxu0
        %v765 = vadd.f32 %v736, %v764
        %766 = vmatmul.f32.gmra.mxu0 %v745
        %v767 = vpop.f32.mrf.mxu0
        %v768 = vadd.f32 %v739, %v767
        %769 = vdwg.mxu0
        %770 = vrot.lane.b32.xlu0 %v699, 126
        %v771 = vpop.permute.xlu0 %770
        %772 = vrot.lane.b32.xlu0 %v700, 126
        %v773 = vpop.permute.xlu0 %772
        %774 = vrot.lane.b32.xlu0 %v701, 126
        %v775 = vpop.permute.xlu0 %774
        %776 = vrot.lane.b32.xlu0 %v702, 126
        %v777 = vpop.permute.xlu0 %776
        %v779 = vsel %vm711, %v284, 0
        %v782 = vsel %vm711, %v285, 0
        %784 = vmatpush.msra.mxu0 0.0
        %785 = vmatpush.msra.mxu0 0.0
        %786 = vmatpush.msra.mxu0 0.0
        %787 = vmatpush.msra.mxu0 0.0
        %788 = vmatpush.msra.mxu0 0.0
        %789 = vmatpush.msra.mxu0 0.0
        %790 = vmatpush.msra.mxu0 0.0
        %791 = vmatpush.msra.mxu0 0.0
        %792 = vmatpush.msra.mxu0 0.0
        %793 = vmatpush.msra.mxu0 0.0
        %794 = vmatpush.msra.mxu0 0.0
        %795 = vmatpush.msra.mxu0 0.0
        %796 = vmatpush.msra.mxu0 %v777
        %797 = vmatpush.msra.mxu0 %v775
        %798 = vmatpush.msra.mxu0 %v773
        %799 = vmatpush.msra.mxu0 %v771
        %800 = vmatmul.f32.gmra.mxu0 %v779
        %v801 = vpop.f32.mrf.mxu0
        %v802 = vadd.f32 0.0, %v801
        %803 = vmatmul.f32.gmra.mxu0 %v782
        %v804 = vpop.f32.mrf.mxu0
        %v805 = vadd.f32 0.0, %v804
        %806 = vdwg.mxu0
        %v807 = vadd.f32 %v765, %v802
        %v808 = vadd.f32 %v768, %v805
        %809 = vrot.lane.b32.xlu0 %v699, 125
        %v810 = vpop.permute.xlu0 %809
        %811 = vrot.lane.b32.xlu0 %v700, 125
        %v812 = vpop.permute.xlu0 %811
        %813 = vrot.lane.b32.xlu0 %v701, 125
        %v814 = vpop.permute.xlu0 %813
        %815 = vrot.lane.b32.xlu0 %v702, 125
        %v816 = vpop.permute.xlu0 %815
        %v818 = vsel %vm711, %v286, 0
        %v821 = vsel %vm711, %v287, 0
        %823 = vmatpush.msra.mxu0 0.0
        %824 = vmatpush.msra.mxu0 0.0
        %825 = vmatpush.msra.mxu0 0.0
        %826 = vmatpush.msra.mxu0 0.0
        %827 = vmatpush.msra.mxu0 0.0
        %828 = vmatpush.msra.mxu0 0.0
        %829 = vmatpush.msra.mxu0 0.0
        %830 = vmatpush.msra.mxu0 0.0
        %831 = vmatpush.msra.mxu0 0.0
        %832 = vmatpush.msra.mxu0 0.0
        %833 = vmatpush.msra.mxu0 0.0
        %834 = vmatpush.msra.mxu0 0.0
        %835 = vmatpush.msra.mxu0 %v816
        %836 = vmatpush.msra.mxu0 %v814
        %837 = vmatpush.msra.mxu0 %v812
        %838 = vmatpush.msra.mxu0 %v810
        %839 = vmatmul.f32.gmra.mxu0 %v818
        %v840 = vpop.f32.mrf.mxu0
        %v841 = vadd.f32 0.0, %v840
        %842 = vmatmul.f32.gmra.mxu0 %v821
        %v843 = vpop.f32.mrf.mxu0
        %v844 = vadd.f32 0.0, %v843
        %845 = vdwg.mxu0
        %v846 = vadd.f32 %v807, %v841
        %v847 = vadd.f32 %v808, %v844
        %848 = vrot.lane.b32.xlu0 %v699, 124
        %v849 = vpop.permute.xlu0 %848
        %850 = vrot.lane.b32.xlu0 %v700, 124
        %v851 = vpop.permute.xlu0 %850
        %852 = vrot.lane.b32.xlu0 %v701, 124
        %v853 = vpop.permute.xlu0 %852
        %854 = vrot.lane.b32.xlu0 %v702, 124
        %v855 = vpop.permute.xlu0 %854
        %v857 = vsel %vm711, %v288, 0
        %v860 = vsel %vm711, %v289, 0
        %862 = vmatpush.msra.mxu0 0.0
        %863 = vmatpush.msra.mxu0 0.0
        %864 = vmatpush.msra.mxu0 0.0
        %865 = vmatpush.msra.mxu0 0.0
        %866 = vmatpush.msra.mxu0 0.0
        %867 = vmatpush.msra.mxu0 0.0
        %868 = vmatpush.msra.mxu0 0.0
        %869 = vmatpush.msra.mxu0 0.0
        %870 = vmatpush.msra.mxu0 0.0
        %871 = vmatpush.msra.mxu0 0.0
        %872 = vmatpush.msra.mxu0 0.0
        %873 = vmatpush.msra.mxu0 0.0
        %874 = vmatpush.msra.mxu0 %v855
        %875 = vmatpush.msra.mxu0 %v853
        %876 = vmatpush.msra.mxu0 %v851
        %877 = vmatpush.msra.mxu0 %v849
        %878 = vmatmul.f32.gmra.mxu0 %v857
        %v879 = vpop.f32.mrf.mxu0
        %v880 = vadd.f32 0.0, %v879
        %881 = vmatmul.f32.gmra.mxu0 %v860
        %v882 = vpop.f32.mrf.mxu0
        %v883 = vadd.f32 0.0, %v882
        %884 = vdwg.mxu0
        %v885 = vadd.f32 %v846, %v880
        %v886 = vadd.f32 %v847, %v883
        %887 = vrot.lane.b32.xlu0 %v699, 123
        %v888 = vpop.permute.xlu0 %887
        %889 = vrot.lane.b32.xlu0 %v700, 123
        %v890 = vpop.permute.xlu0 %889
        %891 = vrot.lane.b32.xlu0 %v701, 123
        %v892 = vpop.permute.xlu0 %891
        %893 = vrot.lane.b32.xlu0 %v702, 123
        %v894 = vpop.permute.xlu0 %893
        %v896 = vsel %vm711, %v290, 0
        %v899 = vsel %vm711, %v291, 0
        %901 = vmatpush.msra.mxu0 0.0
        %902 = vmatpush.msra.mxu0 0.0
        %903 = vmatpush.msra.mxu0 0.0
        %904 = vmatpush.msra.mxu0 0.0
        %905 = vmatpush.msra.mxu0 0.0
        %906 = vmatpush.msra.mxu0 0.0
        %907 = vmatpush.msra.mxu0 0.0
        %908 = vmatpush.msra.mxu0 0.0
        %909 = vmatpush.msra.mxu0 0.0
        %910 = vmatpush.msra.mxu0 0.0
        %911 = vmatpush.msra.mxu0 0.0
        %912 = vmatpush.msra.mxu0 0.0
        %913 = vmatpush.msra.mxu0 %v894
        %914 = vmatpush.msra.mxu0 %v892
        %915 = vmatpush.msra.mxu0 %v890
        %916 = vmatpush.msra.mxu0 %v888
        %917 = vmatmul.f32.gmra.mxu0 %v896
        %v918 = vpop.f32.mrf.mxu0
        %v919 = vadd.f32 0.0, %v918
        %920 = vmatmul.f32.gmra.mxu0 %v899
        %v921 = vpop.f32.mrf.mxu0
        %v922 = vadd.f32 0.0, %v921
        %923 = vdwg.mxu0
        %v924 = vadd.f32 %v885, %v919
        %v925 = vadd.f32 %v886, %v922
        %926 = vrot.lane.b32.xlu0 %v699, 122
        %v927 = vpop.permute.xlu0 %926
        %928 = vrot.lane.b32.xlu0 %v700, 122
        %v929 = vpop.permute.xlu0 %928
        %930 = vrot.lane.b32.xlu0 %v701, 122
        %v931 = vpop.permute.xlu0 %930
        %932 = vrot.lane.b32.xlu0 %v702, 122
        %v933 = vpop.permute.xlu0 %932
        %v935 = vsel %vm711, %v292, 0
        %v938 = vsel %vm711, %v293, 0
        %940 = vmatpush.msra.mxu0 0.0
        %941 = vmatpush.msra.mxu0 0.0
        %942 = vmatpush.msra.mxu0 0.0
        %943 = vmatpush.msra.mxu0 0.0
        %944 = vmatpush.msra.mxu0 0.0
        %945 = vmatpush.msra.mxu0 0.0
        %946 = vmatpush.msra.mxu0 0.0
        %947 = vmatpush.msra.mxu0 0.0
        %948 = vmatpush.msra.mxu0 0.0
        %949 = vmatpush.msra.mxu0 0.0
        %950 = vmatpush.msra.mxu0 0.0
        %951 = vmatpush.msra.mxu0 0.0
        %952 = vmatpush.msra.mxu0 %v933
        %953 = vmatpush.msra.mxu0 %v931
        %954 = vmatpush.msra.mxu0 %v929
        %955 = vmatpush.msra.mxu0 %v927
        %956 = vmatmul.f32.gmra.mxu0 %v935
        %v957 = vpop.f32.mrf.mxu0
        %v958 = vadd.f32 0.0, %v957
        %959 = vmatmul.f32.gmra.mxu0 %v938
        %v960 = vpop.f32.mrf.mxu0
        %v961 = vadd.f32 0.0, %v960
        %962 = vdwg.mxu0
        %v963 = vadd.f32 %v924, %v958
        %v964 = vadd.f32 %v925, %v961
        %965 = vrot.lane.b32.xlu0 %v699, 121
        %v966 = vpop.permute.xlu0 %965
        %967 = vrot.lane.b32.xlu0 %v700, 121
        %v968 = vpop.permute.xlu0 %967
        %969 = vrot.lane.b32.xlu0 %v701, 121
        %v970 = vpop.permute.xlu0 %969
        %971 = vrot.lane.b32.xlu0 %v702, 121
        %v972 = vpop.permute.xlu0 %971
        %v974 = vsel %vm711, %v294, 0
        %v977 = vsel %vm711, %v295, 0
        %979 = vmatpush.msra.mxu0 0.0
        %980 = vmatpush.msra.mxu0 0.0
        %981 = vmatpush.msra.mxu0 0.0
        %982 = vmatpush.msra.mxu0 0.0
        %983 = vmatpush.msra.mxu0 0.0
        %984 = vmatpush.msra.mxu0 0.0
        %985 = vmatpush.msra.mxu0 0.0
        %986 = vmatpush.msra.mxu0 0.0
        %987 = vmatpush.msra.mxu0 0.0
        %988 = vmatpush.msra.mxu0 0.0
        %989 = vmatpush.msra.mxu0 0.0
        %990 = vmatpush.msra.mxu0 0.0
        %991 = vmatpush.msra.mxu0 %v972
        %992 = vmatpush.msra.mxu0 %v970
        %993 = vmatpush.msra.mxu0 %v968
        %994 = vmatpush.msra.mxu0 %v966
        %995 = vmatmul.f32.gmra.mxu0 %v974
        %v996 = vpop.f32.mrf.mxu0
        %v997 = vadd.f32 0.0, %v996
        %998 = vmatmul.f32.gmra.mxu0 %v977
        %v999 = vpop.f32.mrf.mxu0
        %v1000 = vadd.f32 0.0, %v999
        %1001 = vdwg.mxu0
        %v1002 = vadd.f32 %v963, %v997
        %v1003 = vadd.f32 %v964, %v1000
        %v1004 = vld [vmem:[%s5] sm:$0xff]
        %v1005 = vld [vmem:[%s5 + $0x8] sm:$0xff]
        %1007 = vset.pattern.permute.xlu0 0
        %1008 = vperm.xlu0 %1007, %v1004
        %v1009 = vpop.permute.xlu0 %1008
        %1012 = vset.pattern.permute.xlu0 0
        %1013 = vperm.xlu0 %1012, %v1005
        %v1014 = vpop.permute.xlu0 %1013
        %v1016 = vadd.f32 %v1002, %v1009
        %v1017 = vadd.f32 %v1003, %v1014
        %v1018 = vmax.f32 %v1016, 0.0
        %v1019 = vmax.f32 %v1017, 0.0
        %1020 = vst [vmem:[%s242] sm:$0xff] %v1018
        %1021 = vst [vmem:[%s242 + $0x8] sm:$0xff] %v1019
        %s1022 = sand.u32 %s159, 1
        %s1023 = scalar_lea.sflag [#allocation3], %s1022
        %s1024 = sand.u32 %s159, 1
        %s1025 = smul.addr %s1024, 16
        %s1026 = scalar_lea.vmem [#allocation2], %s1025
        // Predicated region
        $region45: #{tpu_custom_call.1} parent=43 // pred_check
          %p1027 = pneg %p169
        $region46: #{tpu_custom_call.1} parent=43 // pred_check_branch
          %1029 = sbr.rel (%p1027) target = $region48
        $region47: #{tpu_custom_call.1} parent=43 // pred_region
          %1031 = vsyncadd %s1023, 0
          %s1032 = smul.addr %s20, 8
          %s1033 = scalar_lea.hbm %s6, %s1032
          %s1034 = sshll.u32 %s1026, 4
          %s1035 = int_to_ptr.vmem [resolvable:$true] %s1034
          %s1036 = sshll.u32 %s1033, 4
          %s1037 = int_to_ptr.hbm [resolvable:$true] %s1036
          %1042 = dma.vmem_to_hbm [thread:$0]  %s1035, 256, %s1037, %s1023, 128, 256, 8
        $region48: #{tpu_custom_call.1} parent=43 // pred_fallthru
          _
      $region44: #{tpu_custom_call.1} parent=5 // pred_fallthru
        _
      %p1043 = scmp.le.s32.totalorder 2, %s15
      // Predicated region
      $region49: #{tpu_custom_call.1} parent=5 // pred_check
        %p1044 = pneg %p1043
      $region50: #{tpu_custom_call.1} parent=5 // pred_check_branch
        %1046 = sbr.rel (%p1044) target = $region52
      $region51: #{tpu_custom_call.1} parent=5 // pred_region
        %s1047 = ssub.s32 %s15, 2
        // Predicated region
        $region53: #{tpu_custom_call.1} parent=51 // pred_check
          %p1048 = pneg %p175
        $region54: #{tpu_custom_call.1} parent=51 // pred_check_branch
          %1050 = sbr.rel (%p1048) target = $region56
        $region55: #{tpu_custom_call.1} parent=51 // pred_region
          %s1051 = sand.u32 %s160, 1
          %s1052 = scalar_lea.sflag [#allocation3], %s1051
          %s1053 = sand.u32 %s160, 1
          %s1054 = smul.addr %s1053, 16
          %s1055 = scalar_lea.vmem [#allocation2], %s1054
          %1057 = dma.done %s1052, 256
        $region56: #{tpu_custom_call.1} parent=51 // pred_fallthru
          _
      $region52: #{tpu_custom_call.1} parent=5 // pred_fallthru
        _
    $region6: #{tpu_custom_call.1} parent=1 // loop_footer
      %s19 = sadd.s32 1, %s15
    $region7: #{tpu_custom_call.1} parent=1 // loop_footer_branch
      %14 = sbr.rel target = $region3
    $region8: #{tpu_custom_call.1} parent=1 // loop_exit
      _
    %1058 = vsyncpa [#allocation3], 1
    %s1059 = scalar_lea.sflag [#allocation3], 1
    %1060 = vsyncpa %s1059, 1

</llo_original>
